<compile_context>
chip_gen: v5e
topology: v5e:2x2
jax: 0.10.0
libtpu: 0.0.40
codegen_flags: <defaults>
</compile_context>

<pallas_src>
import jax
import jax.numpy as jnp
import numpy as np
from jax.experimental import pallas as pl
from jax.experimental.pallas import tpu as pltpu


def _platt_kernel(a_ref, b_ref, u_ref, i_ref, o_ref):
    # a_ref, b_ref: (1,) f32 Platt parameters in SMEM.
    # u_ref, i_ref: (tile_n, D) embedding tiles in VMEM (f32 or bf16).
    # o_ref:        (1, tile_n) f32 calibrated probabilities (lane-dense).
    a = a_ref[0]
    b = b_ref[0]
    u = u_ref[...].astype(jnp.float32)
    v = i_ref[...].astype(jnp.float32)
    # model.forward_pair: row-wise dot product -> logits (tile_n, 1),
    # exact f32 accumulation on the VPU/XLU.
    logits = jnp.sum(u * v, axis=-1, keepdims=True)
    # transform_score: sigmoid(logits * a + b)
    probs = jax.nn.sigmoid(logits * a + b)                  # (tile_n, 1)
    # Lane-dense store: relayout the small (tile_n, 1) column into the
    # (1, tile_n) output row (XLU has slack; avoids masked 1-lane stores and
    # 128x lane-padded output blocks).
    o_ref[...] = probs.reshape(1, -1)


def _round_up(x, m):
    return ((x + m - 1) // m) * m


def platt_forward(u_emb, i_emb, a, b, *, tile_n=None, vmem_limit_bytes=None):
    """sigmoid(a * <u_emb[n], i_emb[n]> + b) for every row n, tiled over N."""
    assert u_emb.shape == i_emb.shape and u_emb.ndim == 2
    N, D = u_emb.shape
    a = jnp.asarray(a, jnp.float32).reshape(1)
    b = jnp.asarray(b, jnp.float32).reshape(1)

    itemsize = jnp.dtype(u_emb.dtype).itemsize
    lane_d = _round_up(D, 128)  # VMEM footprint of one input row (lane-padded)

    if tile_n is None:
        # MiB-scale input blocks so per-step overhead (~0.35 us) is amortized
        # and we sit near the HBM roofline...
        target_block_bytes = 2 * 1024 * 1024
        tile_n = target_block_bytes // (lane_d * itemsize)
        # ...but keep >= ~8 grid steps when the batch is big enough, so the
        # double-buffered DMA pipeline has iterations to overlap and v7x's two
        # TensorCores both get row tiles to work on.
        tile_n = min(tile_n, _round_up(pl.cdiv(N, 8), 128))
        tile_n = min(tile_n, 16384)
    # Multiple of 128: lane-dense output slab + (8/16)-sublane alignment of
    # the (tile_n, D) input blocks for both f32 and bf16.
    tile_n = max(128, _round_up(tile_n, 128))

    n_tiles = pl.cdiv(N, tile_n)
    n_pad = n_tiles * tile_n  # only the tiny f32 output is padded, never inputs

    if vmem_limit_bytes is None:
        # Real (8,128)-tiled VMEM footprint: inputs lane-pad D -> 128,
        # (1, tile_n) output sublane-pads 1 -> 8; everything double-buffered.
        in_bytes = 2 * 2 * tile_n * lane_d * itemsize
        out_bytes = 2 * 8 * tile_n * 4
        vmem_limit_bytes = min(
            48 * 1024 * 1024,                       # headroom on v7x (64 MiB physical)
            max(32 * 1024 * 1024, 2 * (in_bytes + out_bytes)),
        )

    out = pl.pallas_call(
        _platt_kernel,
        out_shape=jax.ShapeDtypeStruct((1, n_pad), jnp.float32),
        grid=(n_tiles,),
        in_specs=[
            pl.BlockSpec(memory_space=pltpu.MemorySpace.SMEM),   # a (scalar)
            pl.BlockSpec(memory_space=pltpu.MemorySpace.SMEM),   # b (scalar)
            pl.BlockSpec((tile_n, D), lambda i: (i, 0)),         # u_emb tile
            pl.BlockSpec((tile_n, D), lambda i: (i, 0)),         # i_emb tile
        ],
        out_specs=pl.BlockSpec((1, tile_n), lambda i: (0, i)),   # lane-dense
        compiler_params=pltpu.CompilerParams(
            # Row tiles are independent -> shard across v7x's 2 TensorCores.
            dimension_semantics=("parallel",),
            vmem_limit_bytes=vmem_limit_bytes,
        ),
    )(a, b, u_emb, i_emb)

    # NOTE: when N % tile_n != 0 the tail rows of the last *input* block are
    # unspecified OOB reads. The math is strictly per-row (no cross-row
    # reduction), so those garbage rows only produce garbage probabilities in
    # the padded region of the output, which is sliced off right here. Do not
    # add any reduction across rows inside the kernel without masking.
    return out.reshape(-1, 1)[:N]


if __name__ == "__main__":
    key = jax.random.PRNGKey(0)
    ku, ki = jax.random.split(key)

    # Small demo shapes consistent with the module: N (user,item) pairs with
    # D-dimensional embeddings. Parameter init exactly as Platt.__init__:
    #   self.a = nn.Parameter(torch.ones(1) * 1); self.b = nn.Parameter(torch.ones(1) * 0)
    N, D = 8, 32
    u_emb = jax.random.normal(ku, (N, D), dtype=jnp.float32)
    i_emb = jax.random.normal(ki, (N, D), dtype=jnp.float32)
    a = jnp.ones((1,), dtype=jnp.float32)
    b = jnp.zeros((1,), dtype=jnp.float32)

    out = jax.block_until_ready(platt_forward(u_emb, i_emb, a, b))
    ref = jax.nn.sigmoid(
        jnp.sum(u_emb * i_emb, axis=-1, keepdims=True) * a[0] + b[0]
    )
    assert out.shape == (N, 1) and out.dtype == jnp.float32
    assert np.allclose(np.asarray(out), np.asarray(ref), atol=2e-5, rtol=1e-4)

    # Multi-tile ragged path (N % tile_n != 0, no host-side input padding)
    # with fitted-looking Platt parameters.
    N2, D2 = 300, 64
    k2u, k2i = jax.random.split(jax.random.PRNGKey(0))
    u2 = jax.random.normal(k2u, (N2, D2), dtype=jnp.float32)
    i2 = jax.random.normal(k2i, (N2, D2), dtype=jnp.float32)
    a2 = jnp.full((1,), 1.7, dtype=jnp.float32)
    b2 = jnp.full((1,), -0.3, dtype=jnp.float32)
    out2 = jax.block_until_ready(platt_forward(u2, i2, a2, b2, tile_n=128))
    ref2 = jax.nn.sigmoid(
        jnp.sum(u2 * i2, axis=-1, keepdims=True) * a2[0] + b2[0]
    )
    assert out2.shape == (N2, 1)
    assert np.allclose(np.asarray(out2), np.asarray(ref2), atol=2e-5, rtol=1e-4)

    # bf16-from-HBM path (halves the HBM traffic of this bandwidth-bound
    # kernel; the kernel upcasts to f32 internally so the math is unchanged).
    N3, D3 = 200, 48
    k3u, k3i = jax.random.split(jax.random.PRNGKey(0), 2)
    u3 = jax.random.normal(k3u, (N3, D3), dtype=jnp.float32).astype(jnp.bfloat16)
    i3 = jax.random.normal(k3i, (N3, D3), dtype=jnp.float32).astype(jnp.bfloat16)
    out3 = jax.block_until_ready(platt_forward(u3, i3, a2, b2))
    ref3 = jax.nn.sigmoid(
        jnp.sum(u3.astype(jnp.float32) * i3.astype(jnp.float32),
                axis=-1, keepdims=True) * a2[0] + b2[0]
    )
    assert out3.shape == (N3, 1)
    assert np.allclose(np.asarray(out3), np.asarray(ref3), atol=2e-5, rtol=1e-4)

    # TODO(synk): fit_params (sklearn LogisticRegression) and ECELoss are
    # offline calibration/eval utilities, not part of the forward pass; not
    # implemented as kernels.
    print("KERNEL_OK")
</pallas_src>

<mosaic_0001>
module attributes {stable_mosaic.version = 11 : i64} {
  func.func @_platt_kernel(%arg0: i32, %arg1: memref<1xf32, #tpu.memory_space<smem>>, %arg2: memref<1xf32, #tpu.memory_space<smem>>, %arg3: memref<128x32xf32, #tpu.memory_space<vmem>>, %arg4: memref<128x32xf32, #tpu.memory_space<vmem>>, %arg5: memref<1x128xf32, #tpu.memory_space<vmem>>) attributes {dimension_semantics = [#tpu.dimension_semantics<parallel>], iteration_bounds = array<i64: 1>, scalar_prefetch = 0 : i64, scratch_operands = 0 : i64, tpu.core_type = #tpu.core_type<tc>, window_params = [{transform_indices = @transform_0, window_bounds = array<i64: 1>}, {transform_indices = @transform_1, window_bounds = array<i64: 1>}, {transform_indices = @transform_2, window_bounds = array<i64: 128, 32>}, {transform_indices = @transform_3, window_bounds = array<i64: 128, 32>}, {transform_indices = @transform_4, window_bounds = array<i64: 1, 128>}]} {
    %c0 = arith.constant 0 : index
    %0 = memref.load %arg1[%c0] : memref<1xf32, #tpu.memory_space<smem>>
    %c0_0 = arith.constant 0 : index
    %1 = memref.load %arg2[%c0_0] : memref<1xf32, #tpu.memory_space<smem>>
    %c0_1 = arith.constant 0 : index
    %c0_2 = arith.constant 0 : index
    %2 = vector.load %arg3[%c0_1, %c0_2] : memref<128x32xf32, #tpu.memory_space<vmem>>, vector<128x32xf32>
    %c0_3 = arith.constant 0 : index
    %c0_4 = arith.constant 0 : index
    %3 = vector.load %arg4[%c0_3, %c0_4] : memref<128x32xf32, #tpu.memory_space<vmem>>, vector<128x32xf32>
    %4 = arith.mulf %2, %3 : vector<128x32xf32>
    %cst = arith.constant dense<0.000000e+00> : vector<128xf32>
    %5 = vector.multi_reduction <add>, %4, %cst [1] : vector<128x32xf32> to vector<128xf32>
    %6 = vector.shape_cast %5 : vector<128xf32> to vector<128x1xf32>
    %7 = vector.broadcast %0 : f32 to vector<128x1xf32>
    %8 = arith.mulf %6, %7 : vector<128x1xf32>
    %9 = vector.broadcast %1 : f32 to vector<128x1xf32>
    %10 = arith.addf %8, %9 : vector<128x1xf32>
    %11 = arith.negf %10 : vector<128x1xf32>
    %12 = math.exp %11 : vector<128x1xf32>
    %cst_5 = arith.constant 1.000000e+00 : f32
    %13 = vector.broadcast %cst_5 : f32 to vector<128x1xf32>
    %14 = arith.addf %13, %12 : vector<128x1xf32>
    %15 = arith.divf %13, %14 : vector<128x1xf32>
    %16 = vector.shape_cast %15 : vector<128x1xf32> to vector<1x128xf32>
    %c0_6 = arith.constant 0 : index
    %c0_7 = arith.constant 0 : index
    %17 = vector.load %arg5[%c0_6, %c0_7] : memref<1x128xf32, #tpu.memory_space<vmem>>, vector<1x128xf32>
    tpu.vector_store %arg5[%c0_6, %c0_7], %16 {strides = array<i32>} : memref<1x128xf32, #tpu.memory_space<vmem>>, vector<1x128xf32>,
    return
  }
  func.func @transform_0(%arg0: i32) -> i32 {
    %c0_i32 = arith.constant 0 : i32
    %c0_i32_0 = arith.constant 0 : i32
    return %c0_i32 : i32
  }
  func.func @transform_1(%arg0: i32) -> i32 {
    %c0_i32 = arith.constant 0 : i32
    %c0_i32_0 = arith.constant 0 : i32
    return %c0_i32 : i32
  }
  func.func @transform_2(%arg0: i32) -> (i32, i32) {
    %c0_i32 = arith.constant 0 : i32
    %c0_i32_0 = arith.constant 0 : i32
    return %arg0, %c0_i32 : i32, i32
  }
  func.func @transform_3(%arg0: i32) -> (i32, i32) {
    %c0_i32 = arith.constant 0 : i32
    %c0_i32_0 = arith.constant 0 : i32
    return %arg0, %c0_i32 : i32, i32
  }
  func.func @transform_4(%arg0: i32) -> (i32, i32) {
    %c0_i32 = arith.constant 0 : i32
    %c0_i32_0 = arith.constant 0 : i32
    return %c0_i32, %arg0 : i32, i32
  }
}

</mosaic_0001>

<llo_original>
// kernel: tpu_custom_call.1
$region0: #{tpu_custom_call.1}
  #allocation0 [shape = 'u32[]', space=smem, size = 0x4, offset = 0x4, fixed_abs, tag = 'smem constant byte address 0x4 - core index']
  #allocation1 [shape = 'u32[72,128]{1,0:T(1,128)}', space=vmem, size = 0x9000, scoped, tag = 'internal scratch']
  #allocation2 [shape = 'f32[1]{0:T(128)S(6)}', space=smem, size = 0x200, scoped, tag = 'scoped memory for tpu_custom_call.1']
  #allocation3 [shape = 'f32[1]{0:T(128)S(6)}', space=smem, size = 0x200, scoped, tag = 'scoped memory for tpu_custom_call.1']
  %s0 = inlined_call_operand.<no memory space> [shape: f32[1], index: 0, kind: input, shape index: {}]
  %s1 = inlined_call_operand.<no memory space> [shape: f32[1], index: 1, kind: input, shape index: {}]
  %s2 = inlined_call_operand.hbm [shape: f32[8,32], index: 2, kind: input, shape index: {}]
  %s3 = inlined_call_operand.hbm [shape: f32[8,32], index: 3, kind: input, shape index: {}]
  %s4 = inlined_call_operand.hbm [shape: f32[1,128], index: 4, kind: output, shape index: {}]
  %s5 = sld [smem:[#allocation0]]
  $region34: #{tpu_custom_call.1} parent=0
    _
  %s7 = ssub.s32 1, %s5
  %s8 = scalar_select 0, %s7, %s5
  %9 = sst [smem:[#allocation2]] %s0
  %10 = sst [smem:[#allocation3]] %s1
  $region1: #{tpu_custom_call.1} parent=0
    #allocation4 [shape = 'u8[65536]{0}', space=vmem, size = 0x10000, scoped, tag = 'input window, operand 2, single buffered']
    #allocation5 [shape = 's32[1]{0}', space=sflag, size = 0x4, scoped, tag = 'scoped memory for tpu_custom_call.1']
    #allocation6 [shape = 's32[1]{0}', space=sflag, size = 0x4, scoped, tag = 'scoped memory for tpu_custom_call.1']
    #allocation7 [shape = 'u8[65536]{0}', space=vmem, size = 0x10000, scoped, tag = 'input window, operand 3, single buffered']
    #allocation8 [shape = 's32[1]{0}', space=sflag, size = 0x4, scoped, tag = 'scoped memory for tpu_custom_call.1']
    #allocation9 [shape = 'u8[512]{0}', space=vmem, size = 0x400, scoped, tag = 'output window, operand 0, single buffered']
    %11 = vsyncpa [#allocation5], 0
    %12 = vsyncpa [#allocation8], 0
    %13 = vsyncpa [#allocation6], 0
    // Predicated region
    $region2: #{tpu_custom_call.1} parent=1 // pred_check
      _
    $region3: #{tpu_custom_call.1} parent=1 // pred_check_branch
      %15 = sbr.rel (0) target = $region5
    $region4: #{tpu_custom_call.1} parent=1 // pred_region
      _
    $region5: #{tpu_custom_call.1} parent=1 // pred_fallthru
      _
    // Predicated region
    $region6: #{tpu_custom_call.1} parent=1 // pred_check
      _
    $region7: #{tpu_custom_call.1} parent=1 // pred_check_branch
      %17 = sbr.rel (0) target = $region9
    $region8: #{tpu_custom_call.1} parent=1 // pred_region
      _
    $region9: #{tpu_custom_call.1} parent=1 // pred_fallthru
      _
    // Predicated region
    $region10: #{tpu_custom_call.1} parent=1 // pred_check
      _
    $region11: #{tpu_custom_call.1} parent=1 // pred_check_branch
      %19 = sbr.rel (0) target = $region13
    $region12: #{tpu_custom_call.1} parent=1 // pred_region
      %21 = vsyncadd [#allocation5], 1920
      %s22 = sshll.u32 %s2, 4
      %s23 = int_to_ptr.hbm [resolvable:$true] %s22
      %s24 = sshll.u32 [#allocation4], 4
      %s25 = int_to_ptr.vmem [resolvable:$true] %s24
      %30 = dma.hbm_to_vmem [thread:$0]  %s23, 128, %s25, [#allocation5], 128, 128, 8
    $region13: #{tpu_custom_call.1} parent=1 // pred_fallthru
      _
    // Predicated region
    $region14: #{tpu_custom_call.1} parent=1 // pred_check
      _
    $region15: #{tpu_custom_call.1} parent=1 // pred_check_branch
      %32 = sbr.rel (0) target = $region17
    $region16: #{tpu_custom_call.1} parent=1 // pred_region
      %34 = vsyncadd [#allocation8], 1920
      %s35 = sshll.u32 %s3, 4
      %s36 = int_to_ptr.hbm [resolvable:$true] %s35
      %s37 = sshll.u32 [#allocation7], 4
      %s38 = int_to_ptr.vmem [resolvable:$true] %s37
      %43 = dma.hbm_to_vmem [thread:$0]  %s36, 128, %s38, [#allocation8], 128, 128, 8
    $region17: #{tpu_custom_call.1} parent=1 // pred_fallthru
      _
    // Predicated region
    $region18: #{tpu_custom_call.1} parent=1 // pred_check
      _
    $region19: #{tpu_custom_call.1} parent=1 // pred_check_branch
      %45 = sbr.rel (0) target = $region21
    $region20: #{tpu_custom_call.1} parent=1 // pred_region
      %47 = dma.done [#allocation5], 2048
    $region21: #{tpu_custom_call.1} parent=1 // pred_fallthru
      _
    // Predicated region
    $region22: #{tpu_custom_call.1} parent=1 // pred_check
      _
    $region23: #{tpu_custom_call.1} parent=1 // pred_check_branch
      %49 = sbr.rel (0) target = $region25
    $region24: #{tpu_custom_call.1} parent=1 // pred_region
      %51 = dma.done [#allocation8], 2048
    $region25: #{tpu_custom_call.1} parent=1 // pred_fallthru
      _
    %s52 = sld [smem:[#allocation2]]
    %s53 = sld [smem:[#allocation3]]
    %v54 = vld [vmem:[#allocation4] sm:$0xff]
    %v55 = vld [vmem:[#allocation4 + $0x8] sm:$0xff]
    %v56 = vld [vmem:[#allocation4 + $0x10] sm:$0xff]
    %v57 = vld [vmem:[#allocation4 + $0x18] sm:$0xff]
    %v58 = vld [vmem:[#allocation4 + $0x20] sm:$0xff]
    %v59 = vld [vmem:[#allocation4 + $0x28] sm:$0xff]
    %v60 = vld [vmem:[#allocation4 + $0x30] sm:$0xff]
    %v61 = vld [vmem:[#allocation4 + $0x38] sm:$0xff]
    %v62 = vld [vmem:[#allocation4 + $0x40] sm:$0xff]
    %v63 = vld [vmem:[#allocation4 + $0x48] sm:$0xff]
    %v64 = vld [vmem:[#allocation4 + $0x50] sm:$0xff]
    %v65 = vld [vmem:[#allocation4 + $0x58] sm:$0xff]
    %v66 = vld [vmem:[#allocation4 + $0x60] sm:$0xff]
    %v67 = vld [vmem:[#allocation4 + $0x68] sm:$0xff]
    %v68 = vld [vmem:[#allocation4 + $0x70] sm:$0xff]
    %v69 = vld [vmem:[#allocation4 + $0x78] sm:$0xff]
    %v70 = vld [vmem:[#allocation7] sm:$0xff]
    %v71 = vld [vmem:[#allocation7 + $0x8] sm:$0xff]
    %v72 = vld [vmem:[#allocation7 + $0x10] sm:$0xff]
    %v73 = vld [vmem:[#allocation7 + $0x18] sm:$0xff]
    %v74 = vld [vmem:[#allocation7 + $0x20] sm:$0xff]
    %v75 = vld [vmem:[#allocation7 + $0x28] sm:$0xff]
    %v76 = vld [vmem:[#allocation7 + $0x30] sm:$0xff]
    %v77 = vld [vmem:[#allocation7 + $0x38] sm:$0xff]
    %v78 = vld [vmem:[#allocation7 + $0x40] sm:$0xff]
    %v79 = vld [vmem:[#allocation7 + $0x48] sm:$0xff]
    %v80 = vld [vmem:[#allocation7 + $0x50] sm:$0xff]
    %v81 = vld [vmem:[#allocation7 + $0x58] sm:$0xff]
    %v82 = vld [vmem:[#allocation7 + $0x60] sm:$0xff]
    %v83 = vld [vmem:[#allocation7 + $0x68] sm:$0xff]
    %v84 = vld [vmem:[#allocation7 + $0x70] sm:$0xff]
    %v85 = vld [vmem:[#allocation7 + $0x78] sm:$0xff]
    %v86 = vmul.f32 %v54, %v70
    %v87 = vmul.f32 %v55, %v71
    %v88 = vmul.f32 %v56, %v72
    %v89 = vmul.f32 %v57, %v73
    %v90 = vmul.f32 %v58, %v74
    %v91 = vmul.f32 %v59, %v75
    %v92 = vmul.f32 %v60, %v76
    %v93 = vmul.f32 %v61, %v77
    %v94 = vmul.f32 %v62, %v78
    %v95 = vmul.f32 %v63, %v79
    %v96 = vmul.f32 %v64, %v80
    %v97 = vmul.f32 %v65, %v81
    %v98 = vmul.f32 %v66, %v82
    %v99 = vmul.f32 %v67, %v83
    %v100 = vmul.f32 %v68, %v84
    %v101 = vmul.f32 %v69, %v85
    %vm102 = vcmask 261120
    %v103 = vsel %vm102, %v86, 0.0
    %104 = vadd.xlane.f32.xlu0 %v103
    %v105 = vpop.xlane.xlu0 %104
    %v106 = vsel %vm102, %v87, 0.0
    %107 = vadd.xlane.f32.xlu0 %v106
    %v108 = vpop.xlane.xlu0 %107
    %v109 = vsel %vm102, %v88, 0.0
    %110 = vadd.xlane.f32.xlu0 %v109
    %v111 = vpop.xlane.xlu0 %110
    %v112 = vsel %vm102, %v89, 0.0
    %113 = vadd.xlane.f32.xlu0 %v112
    %v114 = vpop.xlane.xlu0 %113
    %v115 = vsel %vm102, %v90, 0.0
    %116 = vadd.xlane.f32.xlu0 %v115
    %v117 = vpop.xlane.xlu0 %116
    %v118 = vsel %vm102, %v91, 0.0
    %119 = vadd.xlane.f32.xlu0 %v118
    %v120 = vpop.xlane.xlu0 %119
    %v121 = vsel %vm102, %v92, 0.0
    %122 = vadd.xlane.f32.xlu0 %v121
    %v123 = vpop.xlane.xlu0 %122
    %v124 = vsel %vm102, %v93, 0.0
    %125 = vadd.xlane.f32.xlu0 %v124
    %v126 = vpop.xlane.xlu0 %125
    %v127 = vsel %vm102, %v94, 0.0
    %128 = vadd.xlane.f32.xlu0 %v127
    %v129 = vpop.xlane.xlu0 %128
    %v130 = vsel %vm102, %v95, 0.0
    %131 = vadd.xlane.f32.xlu0 %v130
    %v132 = vpop.xlane.xlu0 %131
    %v133 = vsel %vm102, %v96, 0.0
    %134 = vadd.xlane.f32.xlu0 %v133
    %v135 = vpop.xlane.xlu0 %134
    %v136 = vsel %vm102, %v97, 0.0
    %137 = vadd.xlane.f32.xlu0 %v136
    %v138 = vpop.xlane.xlu0 %137
    %v139 = vsel %vm102, %v98, 0.0
    %140 = vadd.xlane.f32.xlu0 %v139
    %v141 = vpop.xlane.xlu0 %140
    %v142 = vsel %vm102, %v99, 0.0
    %143 = vadd.xlane.f32.xlu0 %v142
    %v144 = vpop.xlane.xlu0 %143
    %v145 = vsel %vm102, %v100, 0.0
    %146 = vadd.xlane.f32.xlu0 %v145
    %v147 = vpop.xlane.xlu0 %146
    %v148 = vsel %vm102, %v101, 0.0
    %149 = vadd.xlane.f32.xlu0 %v148
    %v150 = vpop.xlane.xlu0 %149
    %v151 = vstv %s52
    %v152 = vmul.f32 %v105, %v151
    %v153 = vmul.f32 %v108, %v151
    %v154 = vmul.f32 %v111, %v151
    %v155 = vmul.f32 %v114, %v151
    %v156 = vmul.f32 %v117, %v151
    %v157 = vmul.f32 %v120, %v151
    %v158 = vmul.f32 %v123, %v151
    %v159 = vmul.f32 %v126, %v151
    %v160 = vmul.f32 %v129, %v151
    %v161 = vmul.f32 %v132, %v151
    %v162 = vmul.f32 %v135, %v151
    %v163 = vmul.f32 %v138, %v151
    %v164 = vmul.f32 %v141, %v151
    %v165 = vmul.f32 %v144, %v151
    %v166 = vmul.f32 %v147, %v151
    %v167 = vmul.f32 %v150, %v151
    %v168 = vstv %s53
    %v169 = vadd.f32 %v152, %v168
    %v170 = vadd.f32 %v153, %v168
    %v171 = vadd.f32 %v154, %v168
    %v172 = vadd.f32 %v155, %v168
    %v173 = vadd.f32 %v156, %v168
    %v174 = vadd.f32 %v157, %v168
    %v175 = vadd.f32 %v158, %v168
    %v176 = vadd.f32 %v159, %v168
    %v177 = vadd.f32 %v160, %v168
    %v178 = vadd.f32 %v161, %v168
    %v179 = vadd.f32 %v162, %v168
    %v180 = vadd.f32 %v163, %v168
    %v181 = vadd.f32 %v164, %v168
    %v182 = vadd.f32 %v165, %v168
    %v183 = vadd.f32 %v166, %v168
    %v184 = vadd.f32 %v167, %v168
    %v185 = vxor.u32 %v169, 2147483648
    %v186 = vxor.u32 %v170, 2147483648
    %v187 = vxor.u32 %v171, 2147483648
    %v188 = vxor.u32 %v172, 2147483648
    %v189 = vxor.u32 %v173, 2147483648
    %v190 = vxor.u32 %v174, 2147483648
    %v191 = vxor.u32 %v175, 2147483648
    %v192 = vxor.u32 %v176, 2147483648
    %v193 = vxor.u32 %v177, 2147483648
    %v194 = vxor.u32 %v178, 2147483648
    %v195 = vxor.u32 %v179, 2147483648
    %v196 = vxor.u32 %v180, 2147483648
    %v197 = vxor.u32 %v181, 2147483648
    %v198 = vxor.u32 %v182, 2147483648
    %v199 = vxor.u32 %v183, 2147483648
    %v200 = vxor.u32 %v184, 2147483648
    %v201 = vmul.f32 %v185, 1.442695
    %v202 = vpow.pop %v201
    %v203 = vmul.f32 %v186, 1.442695
    %v204 = vpow.pop %v203
    %v205 = vmul.f32 %v187, 1.442695
    %v206 = vpow.pop %v205
    %v207 = vmul.f32 %v188, 1.442695
    %v208 = vpow.pop %v207
    %v209 = vmul.f32 %v189, 1.442695
    %v210 = vpow.pop %v209
    %v211 = vmul.f32 %v190, 1.442695
    %v212 = vpow.pop %v211
    %v213 = vmul.f32 %v191, 1.442695
    %v214 = vpow.pop %v213
    %v215 = vmul.f32 %v192, 1.442695
    %v216 = vpow.pop %v215
    %v217 = vmul.f32 %v193, 1.442695
    %v218 = vpow.pop %v217
    %v219 = vmul.f32 %v194, 1.442695
    %v220 = vpow.pop %v219
    %v221 = vmul.f32 %v195, 1.442695
    %v222 = vpow.pop %v221
    %v223 = vmul.f32 %v196, 1.442695
    %v224 = vpow.pop %v223
    %v225 = vmul.f32 %v197, 1.442695
    %v226 = vpow.pop %v225
    %v227 = vmul.f32 %v198, 1.442695
    %v228 = vpow.pop %v227
    %v229 = vmul.f32 %v199, 1.442695
    %v230 = vpow.pop %v229
    %v231 = vmul.f32 %v200, 1.442695
    %v232 = vpow.pop %v231
    %v233 = vadd.f32 %v202, 1.0
    %v234 = vadd.f32 %v204, 1.0
    %v235 = vadd.f32 %v206, 1.0
    %v236 = vadd.f32 %v208, 1.0
    %v237 = vadd.f32 %v210, 1.0
    %v238 = vadd.f32 %v212, 1.0
    %v239 = vadd.f32 %v214, 1.0
    %v240 = vadd.f32 %v216, 1.0
    %v241 = vadd.f32 %v218, 1.0
    %v242 = vadd.f32 %v220, 1.0
    %v243 = vadd.f32 %v222, 1.0
    %v244 = vadd.f32 %v224, 1.0
    %v245 = vadd.f32 %v226, 1.0
    %v246 = vadd.f32 %v228, 1.0
    %v247 = vadd.f32 %v230, 1.0
    %v248 = vadd.f32 %v232, 1.0
    %v249 = vrcp.pop %v233
    %v250 = vmul.f32 %v233, %v249
    %v251 = vsub.f32 1.0, %v250
    %v252 = vmul.f32 %v249, %v251
    %v253 = vadd.f32 %v249, %v252
    %vm254 = vweird.f32 %v233
    %vm255 = vweird.f32 %v249
    %vm256 = vmor %vm254, %vm255
    %v257 = vsel %vm256, %v249, %v253
    %v258 = vand.u32 2147483647, %v233
    %vm259 = vcmp.eq.f32.partialorder %v258, 8.507059e+37
    %v260 = vand.u32 %v233, 2147483648
    %v261 = vor.u32 1.1754944e-38, %v260
    %v262 = vsel %vm259, %v261, %v257
    %v263 = vmul.f32 1.0, %v262
    %v264 = vrcp.pop %v234
    %v265 = vmul.f32 %v234, %v264
    %v266 = vsub.f32 1.0, %v265
    %v267 = vmul.f32 %v264, %v266
    %v268 = vadd.f32 %v264, %v267
    %vm269 = vweird.f32 %v234
    %vm270 = vweird.f32 %v264
    %vm271 = vmor %vm269, %vm270
    %v272 = vsel %vm271, %v264, %v268
    %v273 = vand.u32 2147483647, %v234
    %vm274 = vcmp.eq.f32.partialorder %v273, 8.507059e+37
    %v275 = vand.u32 %v234, 2147483648
    %v276 = vor.u32 1.1754944e-38, %v275
    %v277 = vsel %vm274, %v276, %v272
    %v278 = vmul.f32 1.0, %v277
    %v279 = vrcp.pop %v235
    %v280 = vmul.f32 %v235, %v279
    %v281 = vsub.f32 1.0, %v280
    %v282 = vmul.f32 %v279, %v281
    %v283 = vadd.f32 %v279, %v282
    %vm284 = vweird.f32 %v235
    %vm285 = vweird.f32 %v279
    %vm286 = vmor %vm284, %vm285
    %v287 = vsel %vm286, %v279, %v283
    %v288 = vand.u32 2147483647, %v235
    %vm289 = vcmp.eq.f32.partialorder %v288, 8.507059e+37
    %v290 = vand.u32 %v235, 2147483648
    %v291 = vor.u32 1.1754944e-38, %v290
    %v292 = vsel %vm289, %v291, %v287
    %v293 = vmul.f32 1.0, %v292
    %v294 = vrcp.pop %v236
    %v295 = vmul.f32 %v236, %v294
    %v296 = vsub.f32 1.0, %v295
    %v297 = vmul.f32 %v294, %v296
    %v298 = vadd.f32 %v294, %v297
    %vm299 = vweird.f32 %v236
    %vm300 = vweird.f32 %v294
    %vm301 = vmor %vm299, %vm300
    %v302 = vsel %vm301, %v294, %v298
    %v303 = vand.u32 2147483647, %v236
    %vm304 = vcmp.eq.f32.partialorder %v303, 8.507059e+37
    %v305 = vand.u32 %v236, 2147483648
    %v306 = vor.u32 1.1754944e-38, %v305
    %v307 = vsel %vm304, %v306, %v302
    %v308 = vmul.f32 1.0, %v307
    %v309 = vrcp.pop %v237
    %v310 = vmul.f32 %v237, %v309
    %v311 = vsub.f32 1.0, %v310
    %v312 = vmul.f32 %v309, %v311
    %v313 = vadd.f32 %v309, %v312
    %vm314 = vweird.f32 %v237
    %vm315 = vweird.f32 %v309
    %vm316 = vmor %vm314, %vm315
    %v317 = vsel %vm316, %v309, %v313
    %v318 = vand.u32 2147483647, %v237
    %vm319 = vcmp.eq.f32.partialorder %v318, 8.507059e+37
    %v320 = vand.u32 %v237, 2147483648
    %v321 = vor.u32 1.1754944e-38, %v320
    %v322 = vsel %vm319, %v321, %v317
    %v323 = vmul.f32 1.0, %v322
    %v324 = vrcp.pop %v238
    %v325 = vmul.f32 %v238, %v324
    %v326 = vsub.f32 1.0, %v325
    %v327 = vmul.f32 %v324, %v326
    %v328 = vadd.f32 %v324, %v327
    %vm329 = vweird.f32 %v238
    %vm330 = vweird.f32 %v324
    %vm331 = vmor %vm329, %vm330
    %v332 = vsel %vm331, %v324, %v328
    %v333 = vand.u32 2147483647, %v238
    %vm334 = vcmp.eq.f32.partialorder %v333, 8.507059e+37
    %v335 = vand.u32 %v238, 2147483648
    %v336 = vor.u32 1.1754944e-38, %v335
    %v337 = vsel %vm334, %v336, %v332
    %v338 = vmul.f32 1.0, %v337
    %v339 = vrcp.pop %v239
    %v340 = vmul.f32 %v239, %v339
    %v341 = vsub.f32 1.0, %v340
    %v342 = vmul.f32 %v339, %v341
    %v343 = vadd.f32 %v339, %v342
    %vm344 = vweird.f32 %v239
    %vm345 = vweird.f32 %v339
    %vm346 = vmor %vm344, %vm345
    %v347 = vsel %vm346, %v339, %v343
    %v348 = vand.u32 2147483647, %v239
    %vm349 = vcmp.eq.f32.partialorder %v348, 8.507059e+37
    %v350 = vand.u32 %v239, 2147483648
    %v351 = vor.u32 1.1754944e-38, %v350
    %v352 = vsel %vm349, %v351, %v347
    %v353 = vmul.f32 1.0, %v352
    %v354 = vrcp.pop %v240
    %v355 = vmul.f32 %v240, %v354
    %v356 = vsub.f32 1.0, %v355
    %v357 = vmul.f32 %v354, %v356
    %v358 = vadd.f32 %v354, %v357
    %vm359 = vweird.f32 %v240
    %vm360 = vweird.f32 %v354
    %vm361 = vmor %vm359, %vm360
    %v362 = vsel %vm361, %v354, %v358
    %v363 = vand.u32 2147483647, %v240
    %vm364 = vcmp.eq.f32.partialorder %v363, 8.507059e+37
    %v365 = vand.u32 %v240, 2147483648
    %v366 = vor.u32 1.1754944e-38, %v365
    %v367 = vsel %vm364, %v366, %v362
    %v368 = vmul.f32 1.0, %v367
    %v369 = vrcp.pop %v241
    %v370 = vmul.f32 %v241, %v369
    %v371 = vsub.f32 1.0, %v370
    %v372 = vmul.f32 %v369, %v371
    %v373 = vadd.f32 %v369, %v372
    %vm374 = vweird.f32 %v241
    %vm375 = vweird.f32 %v369
    %vm376 = vmor %vm374, %vm375
    %v377 = vsel %vm376, %v369, %v373
    %v378 = vand.u32 2147483647, %v241
    %vm379 = vcmp.eq.f32.partialorder %v378, 8.507059e+37
    %v380 = vand.u32 %v241, 2147483648
    %v381 = vor.u32 1.1754944e-38, %v380
    %v382 = vsel %vm379, %v381, %v377
    %v383 = vmul.f32 1.0, %v382
    %v384 = vrcp.pop %v242
    %v385 = vmul.f32 %v242, %v384
    %v386 = vsub.f32 1.0, %v385
    %v387 = vmul.f32 %v384, %v386
    %v388 = vadd.f32 %v384, %v387
    %vm389 = vweird.f32 %v242
    %vm390 = vweird.f32 %v384
    %vm391 = vmor %vm389, %vm390
    %v392 = vsel %vm391, %v384, %v388
    %v393 = vand.u32 2147483647, %v242
    %vm394 = vcmp.eq.f32.partialorder %v393, 8.507059e+37
    %v395 = vand.u32 %v242, 2147483648
    %v396 = vor.u32 1.1754944e-38, %v395
    %v397 = vsel %vm394, %v396, %v392
    %v398 = vmul.f32 1.0, %v397
    %v399 = vrcp.pop %v243
    %v400 = vmul.f32 %v243, %v399
    %v401 = vsub.f32 1.0, %v400
    %v402 = vmul.f32 %v399, %v401
    %v403 = vadd.f32 %v399, %v402
    %vm404 = vweird.f32 %v243
    %vm405 = vweird.f32 %v399
    %vm406 = vmor %vm404, %vm405
    %v407 = vsel %vm406, %v399, %v403
    %v408 = vand.u32 2147483647, %v243
    %vm409 = vcmp.eq.f32.partialorder %v408, 8.507059e+37
    %v410 = vand.u32 %v243, 2147483648
    %v411 = vor.u32 1.1754944e-38, %v410
    %v412 = vsel %vm409, %v411, %v407
    %v413 = vmul.f32 1.0, %v412
    %v414 = vrcp.pop %v244
    %v415 = vmul.f32 %v244, %v414
    %v416 = vsub.f32 1.0, %v415
    %v417 = vmul.f32 %v414, %v416
    %v418 = vadd.f32 %v414, %v417
    %vm419 = vweird.f32 %v244
    %vm420 = vweird.f32 %v414
    %vm421 = vmor %vm419, %vm420
    %v422 = vsel %vm421, %v414, %v418
    %v423 = vand.u32 2147483647, %v244
    %vm424 = vcmp.eq.f32.partialorder %v423, 8.507059e+37
    %v425 = vand.u32 %v244, 2147483648
    %v426 = vor.u32 1.1754944e-38, %v425
    %v427 = vsel %vm424, %v426, %v422
    %v428 = vmul.f32 1.0, %v427
    %v429 = vrcp.pop %v245
    %v430 = vmul.f32 %v245, %v429
    %v431 = vsub.f32 1.0, %v430
    %v432 = vmul.f32 %v429, %v431
    %v433 = vadd.f32 %v429, %v432
    %vm434 = vweird.f32 %v245
    %vm435 = vweird.f32 %v429
    %vm436 = vmor %vm434, %vm435
    %v437 = vsel %vm436, %v429, %v433
    %v438 = vand.u32 2147483647, %v245
    %vm439 = vcmp.eq.f32.partialorder %v438, 8.507059e+37
    %v440 = vand.u32 %v245, 2147483648
    %v441 = vor.u32 1.1754944e-38, %v440
    %v442 = vsel %vm439, %v441, %v437
    %v443 = vmul.f32 1.0, %v442
    %v444 = vrcp.pop %v246
    %v445 = vmul.f32 %v246, %v444
    %v446 = vsub.f32 1.0, %v445
    %v447 = vmul.f32 %v444, %v446
    %v448 = vadd.f32 %v444, %v447
    %vm449 = vweird.f32 %v246
    %vm450 = vweird.f32 %v444
    %vm451 = vmor %vm449, %vm450
    %v452 = vsel %vm451, %v444, %v448
    %v453 = vand.u32 2147483647, %v246
    %vm454 = vcmp.eq.f32.partialorder %v453, 8.507059e+37
    %v455 = vand.u32 %v246, 2147483648
    %v456 = vor.u32 1.1754944e-38, %v455
    %v457 = vsel %vm454, %v456, %v452
    %v458 = vmul.f32 1.0, %v457
    %v459 = vrcp.pop %v247
    %v460 = vmul.f32 %v247, %v459
    %v461 = vsub.f32 1.0, %v460
    %v462 = vmul.f32 %v459, %v461
    %v463 = vadd.f32 %v459, %v462
    %vm464 = vweird.f32 %v247
    %vm465 = vweird.f32 %v459
    %vm466 = vmor %vm464, %vm465
    %v467 = vsel %vm466, %v459, %v463
    %v468 = vand.u32 2147483647, %v247
    %vm469 = vcmp.eq.f32.partialorder %v468, 8.507059e+37
    %v470 = vand.u32 %v247, 2147483648
    %v471 = vor.u32 1.1754944e-38, %v470
    %v472 = vsel %vm469, %v471, %v467
    %v473 = vmul.f32 1.0, %v472
    %v474 = vrcp.pop %v248
    %v475 = vmul.f32 %v248, %v474
    %v476 = vsub.f32 1.0, %v475
    %v477 = vmul.f32 %v474, %v476
    %v478 = vadd.f32 %v474, %v477
    %vm479 = vweird.f32 %v248
    %vm480 = vweird.f32 %v474
    %vm481 = vmor %vm479, %vm480
    %v482 = vsel %vm481, %v474, %v478
    %v483 = vand.u32 2147483647, %v248
    %vm484 = vcmp.eq.f32.partialorder %v483, 8.507059e+37
    %v485 = vand.u32 %v248, 2147483648
    %v486 = vor.u32 1.1754944e-38, %v485
    %v487 = vsel %vm484, %v486, %v482
    %v488 = vmul.f32 1.0, %v487
    %v505 = vlaneseq
    %v506 = vand.u32 %v505, 127
    %v507 = vperm.slane %v263, %v506
    %v508 = vadd.s32 %v506, 4294967288
    %v509 = vperm.slane %v278, %v508
    %vm510 = vcmask 130112
    %v511 = vsel %vm510, %v509, %v507
    %v512 = vadd.s32 %v506, 4294967280
    %v513 = vperm.slane %v293, %v512
    %vm514 = vcmask 195712
    %v515 = vsel %vm514, %v513, %v511
    %v516 = vadd.s32 %v506, 4294967272
    %v517 = vperm.slane %v308, %v516
    %vm518 = vcmask 261312
    %v519 = vsel %vm518, %v517, %v515
    %v520 = vadd.s32 %v506, 4294967264
    %v521 = vperm.slane %v323, %v520
    %vm522 = vcmask 326912
    %v523 = vsel %vm522, %v521, %v519
    %v524 = vadd.s32 %v506, 4294967256
    %v525 = vperm.slane %v338, %v524
    %vm526 = vcmask 392512
    %v527 = vsel %vm526, %v525, %v523
    %v528 = vadd.s32 %v506, 4294967248
    %v529 = vperm.slane %v353, %v528
    %vm530 = vcmask 458112
    %v531 = vsel %vm530, %v529, %v527
    %v532 = vadd.s32 %v506, 4294967240
    %v533 = vperm.slane %v368, %v532
    %vm534 = vcmask 523712
    %v535 = vsel %vm534, %v533, %v531
    %v536 = vadd.s32 %v506, 4294967232
    %v537 = vperm.slane %v383, %v536
    %vm538 = vcmask 589312
    %v539 = vsel %vm538, %v537, %v535
    %v540 = vadd.s32 %v506, 4294967224
    %v541 = vperm.slane %v398, %v540
    %vm542 = vcmask 654912
    %v543 = vsel %vm542, %v541, %v539
    %v544 = vadd.s32 %v506, 4294967216
    %v545 = vperm.slane %v413, %v544
    %vm546 = vcmask 720512
    %v547 = vsel %vm546, %v545, %v543
    %v548 = vadd.s32 %v506, 4294967208
    %v549 = vperm.slane %v428, %v548
    %vm550 = vcmask 786112
    %v551 = vsel %vm550, %v549, %v547
    %v552 = vadd.s32 %v506, 4294967200
    %v553 = vperm.slane %v443, %v552
    %vm554 = vcmask 851712
    %v555 = vsel %vm554, %v553, %v551
    %v556 = vadd.s32 %v506, 4294967192
    %v557 = vperm.slane %v458, %v556
    %vm558 = vcmask 917312
    %v559 = vsel %vm558, %v557, %v555
    %v560 = vadd.s32 %v506, 4294967184
    %v561 = vperm.slane %v473, %v560
    %vm562 = vcmask 982912
    %v563 = vsel %vm562, %v561, %v559
    %v564 = vadd.s32 %v506, 4294967176
    %v565 = vperm.slane %v488, %v564
    %vm566 = vcmask 1048512
    %v567 = vsel %vm566, %v565, %v563
    %569 = vst [vmem:[#allocation9] sm:$0x1] %v567
    // Predicated region
    $region26: #{tpu_custom_call.1} parent=1 // pred_check
      _
    $region27: #{tpu_custom_call.1} parent=1 // pred_check_branch
      %571 = sbr.rel (0) target = $region29
    $region28: #{tpu_custom_call.1} parent=1 // pred_region
      %573 = vsyncadd [#allocation6], 0
      %s575 = sshll.u32 [#allocation9], 4
      %s576 = int_to_ptr.vmem [resolvable:$true] %s575
      %s577 = sshll.u32 %s4, 4
      %s578 = int_to_ptr.hbm [resolvable:$true] %s577
      %580 = dma.vmem_to_hbm [thread:$0]  %s576, 16, %s578, [#allocation6]
    $region29: #{tpu_custom_call.1} parent=1 // pred_fallthru
      _
    // Predicated region
    $region30: #{tpu_custom_call.1} parent=1 // pred_check
      _
    $region31: #{tpu_custom_call.1} parent=1 // pred_check_branch
      %582 = sbr.rel (0) target = $region33
    $region32: #{tpu_custom_call.1} parent=1 // pred_region
      %584 = dma.done [#allocation6], 16
    $region33: #{tpu_custom_call.1} parent=1 // pred_fallthru
      _
    %585 = vsyncpa [#allocation5], 1
    %586 = vsyncpa [#allocation8], 1
    %587 = vsyncpa [#allocation6], 1

</llo_original>
